<compile_context>
chip_gen: v7x
topology: tpu7x:2x2x1
jax: 0.10.0
libtpu: 0.0.40
codegen_flags: <defaults>
</compile_context>

<pallas_src>
import functools

import jax
import jax.numpy as jnp
from jax.experimental import pallas as pl
from jax.experimental.pallas import tpu as pltpu

INPUT_DIM = 39
HIDDEN_DIM = 48
EMBED_DIM = 64

# Force >=2 grid steps (so ("parallel",) can use both v7x TensorCores) once the
# batch has at least this many *folded* rows; below that, the split overhead
# isn't worth it on single-TC chips.
_MIN_FOLDED_ROWS_FOR_SPLIT = 2048


def _round_up(n, m):
    return ((n + m - 1) // m) * m


def default_fold():
    """Row-fold factor per MXU width: 2 on 128-wide MXUs (<= v5), 4 on 256-wide (v6e/v7x)."""
    try:
        kind = jax.devices()[0].device_kind.lower()
    except Exception:
        return 2
    for tag in ("v2", "v3", "v4", "v5"):
        if tag in kind:
            return 2
    return 4


def fold_params(w1, b1, w2, b2, fold=2):
    """Precompute block-diagonal ("row-folded") weights ONCE, outside the hot path.

    [x_0 | ... | x_{f-1}] @ blockdiag(W, ..., W) == [x_0 @ W | ... | x_{f-1} @ W],
    so `fold` batch rows packed side-by-side along the lane axis share one
    lane-dense matmul; the math is bit-identical to the unfolded MLP.
    """
    eye = jnp.eye(fold, dtype=w1.dtype)
    w1f = jnp.kron(eye, w1)                        # (fold*39, fold*48)
    w2f = jnp.kron(eye, w2)                        # (fold*48, fold*64)
    b1f = jnp.tile(b1.reshape(1, -1), (1, fold))   # (1, fold*48)
    b2f = jnp.tile(b2.reshape(1, -1), (1, fold))   # (1, fold*64)
    return w1f, b1f, w2f, b2f


def _mlp_kernel(x_ref, w1_ref, b1_ref, w2_ref, b2_ref, o_ref, *, precision):
    # Hot path: two MXU matmuls + VPU bias-add / ReLU, fully fused in VMEM.
    # Operands are in the folded layout, so the final store is a full-lane
    # (128/256-wide) unmasked vst.
    x = x_ref[...]
    h = jnp.dot(x, w1_ref[...], preferred_element_type=jnp.float32,
                precision=precision) + b1_ref[...]
    h = jnp.maximum(h, 0.0)
    y = jnp.dot(h, w2_ref[...], preferred_element_type=jnp.float32,
                precision=precision) + b2_ref[...]
    o_ref[...] = jnp.maximum(y, 0.0).astype(o_ref.dtype)


@functools.partial(jax.jit, static_argnames=("block_b", "precision"))
def hrv_feature_embedder(x, w1f, b1f, w2f, b2f, *, block_b=8192,
                         precision=jax.lax.Precision.HIGHEST):
    """x: (B, 39) f32 -> (B, 64) f32.  w*f/b*f come from fold_params()."""
    B, F = x.shape
    assert F == INPUT_DIM
    IN_F, HID_F = w1f.shape
    HID_F_b, EMB_F = w2f.shape
    fold = IN_F // F
    assert fold * F == IN_F and HID_F == HID_F_b and EMB_F % fold == 0
    E = EMB_F // fold
    assert E == EMBED_DIM
    assert block_b >= 8 * fold and block_b % 8 == 0

    # Pad only to a multiple of the fold factor (<= fold-1 rows, usually a
    # no-op).  Ragged last *tiles* are left to Pallas partial-block masking
    # instead of a full jnp.pad copy of x (which would add ~75% extra HBM
    # traffic on this memory-bound kernel).  OOB rows in the final input block
    # are garbage but independent; their writeback is discarded by Pallas.
    B_pad = _round_up(B, fold)
    if B_pad != B:
        x = jnp.pad(x, ((0, B_pad - B), (0, 0)))
    B_fold = B_pad // fold
    x_fold = x.reshape(B_fold, IN_F)          # free: contiguous row-major

    # ---- tile selection -----------------------------------------------------
    hb_cap = max(8, block_b // fold)                 # folded rows per grid step
    n_steps = pl.cdiv(B_fold, hb_cap)
    if n_steps < 2 and B_fold >= 2 * _MIN_FOLDED_ROWS_FOR_SPLIT:
        n_steps = 2                                  # keep both v7x TCs busy
    hb = _round_up(pl.cdiv(B_fold, n_steps), 8)      # balanced, sublane-aligned
    n_steps = pl.cdiv(B_fold, hb)

    flops = 2 * B_fold * (IN_F * HID_F + HID_F * EMB_F)
    bytes_accessed = 4 * (B_fold * (IN_F + EMB_F)
                          + IN_F * HID_F + HID_F + HID_F * EMB_F + EMB_F)

    kernel = functools.partial(_mlp_kernel, precision=precision)

    out_fold = pl.pallas_call(
        kernel,
        out_shape=jax.ShapeDtypeStruct((B_fold, EMB_F), jnp.float32),
        grid_spec=pltpu.PrefetchScalarGridSpec(
            num_scalar_prefetch=0,
            grid=(n_steps,),
            in_specs=[
                # streamed batch tile of folded activations
                pl.BlockSpec((hb, IN_F), lambda i: (i, 0)),
                # weights / biases: constant index_map -> Pallas keeps them
                # resident in VMEM and skips the re-copy on every grid step.
                pl.BlockSpec((IN_F, HID_F), lambda i: (0, 0)),
                pl.BlockSpec((1, HID_F), lambda i: (0, 0)),
                pl.BlockSpec((HID_F, EMB_F), lambda i: (0, 0)),
                pl.BlockSpec((1, EMB_F), lambda i: (0, 0)),
            ],
            out_specs=pl.BlockSpec((hb, EMB_F), lambda i: (i, 0)),
        ),
        compiler_params=pltpu.CompilerParams(
            # batch axis is independent -> shards across TCs on v7x megacore
            dimension_semantics=("parallel",),
        ),
        cost_estimate=pl.CostEstimate(
            flops=flops, transcendentals=0, bytes_accessed=bytes_accessed),
    )(x_fold, w1f, b1f, w2f, b2f)

    # Unfold: (B_pad/fold, fold*64) row-major is bit-identical to (B_pad, 64).
    out = out_fold.reshape(B_pad, EMBED_DIM)
    return out[:B] if B_pad != B else out


def init_params(key):
    """Deterministic init mimicking PyTorch nn.Linear default (U[-1/sqrt(fan_in), +1/sqrt(fan_in)])."""
    k1, k2, k3, k4 = jax.random.split(key, 4)
    bound1 = 1.0 / jnp.sqrt(float(INPUT_DIM))
    bound2 = 1.0 / jnp.sqrt(float(HIDDEN_DIM))
    w1 = jax.random.uniform(k1, (INPUT_DIM, HIDDEN_DIM), jnp.float32, -bound1, bound1)
    b1 = jax.random.uniform(k2, (1, HIDDEN_DIM), jnp.float32, -bound1, bound1)
    w2 = jax.random.uniform(k3, (HIDDEN_DIM, EMBED_DIM), jnp.float32, -bound2, bound2)
    b2 = jax.random.uniform(k4, (1, EMBED_DIM), jnp.float32, -bound2, bound2)
    return w1, b1, w2, b2


def reference(x, w1, b1, w2, b2, precision=jax.lax.Precision.HIGHEST):
    h = jnp.maximum(jnp.dot(x, w1, precision=precision) + b1, 0.0)
    return jnp.maximum(jnp.dot(h, w2, precision=precision) + b2, 0.0)


if __name__ == "__main__":
    key = jax.random.PRNGKey(0)
    kx, kp = jax.random.split(key)

    w1, b1, w2, b2 = init_params(kp)

    # Small ragged batch (13 rows): exercises fold padding + single-step grid,
    # for both fold factors (regardless of which one auto-select would pick).
    x_small = jax.random.normal(kx, (13, INPUT_DIM), jnp.float32)
    ref_small = reference(x_small, w1, b1, w2, b2)
    for fold in (2, 4):
        p = fold_params(w1, b1, w2, b2, fold=fold)
        out_small = jax.block_until_ready(
            hrv_feature_embedder(x_small, *p, block_b=32))
        assert out_small.shape == (13, EMBED_DIM)
        assert jnp.allclose(out_small, ref_small, atol=1e-4, rtol=1e-4)

    # Multi-step grid with a partial (masked) final block: 40 rows, tiny tile.
    x_multi = jax.random.normal(kx, (40, INPUT_DIM), jnp.float32)
    ref_multi = reference(x_multi, w1, b1, w2, b2)
    p2 = fold_params(w1, b1, w2, b2, fold=2)
    out_multi = jax.block_until_ready(
        hrv_feature_embedder(x_multi, *p2, block_b=16))
    assert out_multi.shape == (40, EMBED_DIM)
    assert jnp.allclose(out_multi, ref_multi, atol=1e-4, rtol=1e-4)

    # Default configuration (auto fold for this chip generation, block_b=8192).
    pf = fold_params(w1, b1, w2, b2, fold=default_fold())
    out_def = jax.block_until_ready(hrv_feature_embedder(x_small, *pf))
    assert out_def.shape == (13, EMBED_DIM)
    assert jnp.allclose(out_def, ref_small, atol=1e-4, rtol=1e-4)

    print("KERNEL_OK")
</pallas_src>

<mosaic_0001>
module attributes {stable_mosaic.version = 11 : i64} {
  func.func @_mlp_kernel(%arg0: i32, %arg1: memref<8x78xf32, #tpu.memory_space<vmem>>, %arg2: memref<78x96xf32, #tpu.memory_space<vmem>>, %arg3: memref<1x96xf32, #tpu.memory_space<vmem>>, %arg4: memref<96x128xf32, #tpu.memory_space<vmem>>, %arg5: memref<1x128xf32, #tpu.memory_space<vmem>>, %arg6: memref<8x128xf32, #tpu.memory_space<vmem>>) attributes {dimension_semantics = [#tpu.dimension_semantics<parallel>], iteration_bounds = array<i64: 1>, scalar_prefetch = 0 : i64, scratch_operands = 0 : i64, tpu.core_type = #tpu.core_type<tc>, window_params = [{transform_indices = @transform_0, window_bounds = array<i64: 8, 78>}, {pipeline_mode = #tpu.pipeline_mode<synchronous>, transform_indices = @transform_1, window_bounds = array<i64: 78, 96>}, {pipeline_mode = #tpu.pipeline_mode<synchronous>, transform_indices = @transform_2, window_bounds = array<i64: 1, 96>}, {pipeline_mode = #tpu.pipeline_mode<synchronous>, transform_indices = @transform_3, window_bounds = array<i64: 96, 128>}, {pipeline_mode = #tpu.pipeline_mode<synchronous>, transform_indices = @transform_4, window_bounds = array<i64: 1, 128>}, {transform_indices = @transform_5, window_bounds = array<i64: 8, 128>}]} {
    %c0 = arith.constant 0 : index
    %c0_0 = arith.constant 0 : index
    %0 = vector.load %arg1[%c0, %c0_0] : memref<8x78xf32, #tpu.memory_space<vmem>>, vector<8x78xf32>
    %c0_1 = arith.constant 0 : index
    %c0_2 = arith.constant 0 : index
    %1 = vector.load %arg2[%c0_1, %c0_2] : memref<78x96xf32, #tpu.memory_space<vmem>>, vector<78x96xf32>
    %cst = arith.constant dense<0.000000e+00> : vector<8x96xf32>
    %2 = tpu.matmul %0, %1, %cst {dimension_numbers = #tpu.dot_dimension_numbers<[1], [0], [0], [1], [0, 0, 1, 1], [], []>, precision = #tpu.contract_precision<fp32>} : vector<8x78xf32>, vector<78x96xf32>, vector<8x96xf32> -> vector<8x96xf32>
    %c0_3 = arith.constant 0 : index
    %c0_4 = arith.constant 0 : index
    %3 = vector.load %arg3[%c0_3, %c0_4] : memref<1x96xf32, #tpu.memory_space<vmem>>, vector<1x96xf32>
    %4 = vector.broadcast %3 : vector<1x96xf32> to vector<8x96xf32>
    %5 = arith.addf %2, %4 : vector<8x96xf32>
    %cst_5 = arith.constant 0.000000e+00 : f32
    %6 = vector.broadcast %cst_5 : f32 to vector<8x96xf32>
    %7 = arith.maximumf %5, %6 : vector<8x96xf32>
    %c0_6 = arith.constant 0 : index
    %c0_7 = arith.constant 0 : index
    %8 = vector.load %arg4[%c0_6, %c0_7] : memref<96x128xf32, #tpu.memory_space<vmem>>, vector<96x128xf32>
    %cst_8 = arith.constant dense<0.000000e+00> : vector<8x128xf32>
    %9 = tpu.matmul %7, %8, %cst_8 {dimension_numbers = #tpu.dot_dimension_numbers<[1], [0], [0], [1], [0, 0, 1, 1], [], []>, precision = #tpu.contract_precision<fp32>} : vector<8x96xf32>, vector<96x128xf32>, vector<8x128xf32> -> vector<8x128xf32>
    %c0_9 = arith.constant 0 : index
    %c0_10 = arith.constant 0 : index
    %10 = vector.load %arg5[%c0_9, %c0_10] : memref<1x128xf32, #tpu.memory_space<vmem>>, vector<1x128xf32>
    %11 = vector.broadcast %10 : vector<1x128xf32> to vector<8x128xf32>
    %12 = arith.addf %9, %11 : vector<8x128xf32>
    %cst_11 = arith.constant 0.000000e+00 : f32
    %13 = vector.broadcast %cst_11 : f32 to vector<8x128xf32>
    %14 = arith.maximumf %12, %13 : vector<8x128xf32>
    %c0_12 = arith.constant 0 : index
    %c0_13 = arith.constant 0 : index
    %15 = vector.load %arg6[%c0_12, %c0_13] : memref<8x128xf32, #tpu.memory_space<vmem>>, vector<8x128xf32>
    tpu.vector_store %arg6[%c0_12, %c0_13], %14 {strides = array<i32>} : memref<8x128xf32, #tpu.memory_space<vmem>>, vector<8x128xf32>,
    return
  }
  func.func @transform_0(%arg0: i32) -> (i32, i32) {
    %c0_i32 = arith.constant 0 : i32
    %c0_i32_0 = arith.constant 0 : i32
    return %arg0, %c0_i32 : i32, i32
  }
  func.func @transform_1(%arg0: i32) -> (i32, i32) {
    %c0_i32 = arith.constant 0 : i32
    %c0_i32_0 = arith.constant 0 : i32
    %c0_i32_1 = arith.constant 0 : i32
    return %c0_i32, %c0_i32_0 : i32, i32
  }
  func.func @transform_2(%arg0: i32) -> (i32, i32) {
    %c0_i32 = arith.constant 0 : i32
    %c0_i32_0 = arith.constant 0 : i32
    %c0_i32_1 = arith.constant 0 : i32
    return %c0_i32, %c0_i32_0 : i32, i32
  }
  func.func @transform_3(%arg0: i32) -> (i32, i32) {
    %c0_i32 = arith.constant 0 : i32
    %c0_i32_0 = arith.constant 0 : i32
    %c0_i32_1 = arith.constant 0 : i32
    return %c0_i32, %c0_i32_0 : i32, i32
  }
  func.func @transform_4(%arg0: i32) -> (i32, i32) {
    %c0_i32 = arith.constant 0 : i32
    %c0_i32_0 = arith.constant 0 : i32
    %c0_i32_1 = arith.constant 0 : i32
    return %c0_i32, %c0_i32_0 : i32, i32
  }
  func.func @transform_5(%arg0: i32) -> (i32, i32) {
    %c0_i32 = arith.constant 0 : i32
    %c0_i32_0 = arith.constant 0 : i32
    return %arg0, %c0_i32 : i32, i32
  }
}

</mosaic_0001>

<llo_original>
// kernel: hrv_feature_embedder.1
$region0: #{hrv_feature_embedder.1}
  #allocation0 [shape = 'u32[]', space=smem, size = 0x4, offset = 0x4, fixed_abs, tag = 'smem constant byte address 0x4 - core index']
  #allocation1 [shape = 'u32[144,128]{1,0:T(1,128)}', space=vmem, size = 0x12000, scoped, tag = 'internal scratch']
  %s0 = inlined_call_operand.vmem [shape: f32[7,78], index: 0, kind: input, shape index: {}]
  %s1 = inlined_call_operand.hbm [shape: f32[78,96], index: 1, kind: input, shape index: {}]
  %s2 = inlined_call_operand.vmem [shape: f32[1,96], index: 2, kind: input, shape index: {}]
  %s3 = inlined_call_operand.hbm [shape: f32[96,128], index: 3, kind: input, shape index: {}]
  %s4 = inlined_call_operand.vmem [shape: f32[1,128], index: 4, kind: input, shape index: {}]
  %s5 = inlined_call_operand.vmem [shape: f32[7,128], index: 5, kind: output, shape index: {}]
  %s6 = sld [smem:[#allocation0]]
  $region38: #{hrv_feature_embedder.1} parent=0
    _
  %s8 = ssub.s32 1, %s6
  %s9 = scalar_select 0, %s8, %s6
  $region1: #{hrv_feature_embedder.1} parent=0
    #allocation2 [shape = 'u8[40960]{0}', space=vmem, size = 0xa000, scoped, tag = 'input window, operand 1, single buffered']
    #allocation3 [shape = 's32[1]{0}', space=sflag, size = 0x4, scoped, tag = 'scoped memory for hrv_feature_embedder.1']
    #allocation4 [shape = 'u8[49152]{0}', space=vmem, size = 0xc000, scoped, tag = 'input window, operand 3, single buffered']
    #allocation5 [shape = 's32[1]{0}', space=sflag, size = 0x4, scoped, tag = 'scoped memory for hrv_feature_embedder.1']
    %10 = vsyncpa [#allocation3], 0
    %11 = vsyncpa [#allocation5], 0
    // Predicated region
    $region2: #{hrv_feature_embedder.1} parent=1 // pred_check
      _
    $region3: #{hrv_feature_embedder.1} parent=1 // pred_check_branch
      %13 = sbr.rel (0) target = $region5
    $region4: #{hrv_feature_embedder.1} parent=1 // pred_region
      _
    $region5: #{hrv_feature_embedder.1} parent=1 // pred_fallthru
      _
    // Predicated region
    $region6: #{hrv_feature_embedder.1} parent=1 // pred_check
      _
    $region7: #{hrv_feature_embedder.1} parent=1 // pred_check_branch
      %15 = sbr.rel (0) target = $region9
    $region8: #{hrv_feature_embedder.1} parent=1 // pred_region
      %s17 = ssub.s32 1280, 1280
      %18 = vsyncadd [#allocation3], %s17
      %s19 = sshll.u32 [#allocation2], 4
      %s20 = int_to_ptr.vmem [resolvable:$true] %s19
      %25 = dma.hbm_to_vmem [thread:$0]  %s1, 1280, %s20, [#allocation3], 128, 128, 8
    $region9: #{hrv_feature_embedder.1} parent=1 // pred_fallthru
      _
    // Predicated region
    $region10: #{hrv_feature_embedder.1} parent=1 // pred_check
      _
    $region11: #{hrv_feature_embedder.1} parent=1 // pred_check_branch
      %27 = sbr.rel (0) target = $region13
    $region12: #{hrv_feature_embedder.1} parent=1 // pred_region
      _
    $region13: #{hrv_feature_embedder.1} parent=1 // pred_fallthru
      _
    // Predicated region
    $region14: #{hrv_feature_embedder.1} parent=1 // pred_check
      _
    $region15: #{hrv_feature_embedder.1} parent=1 // pred_check_branch
      %29 = sbr.rel (0) target = $region17
    $region16: #{hrv_feature_embedder.1} parent=1 // pred_region
      %s31 = ssub.s32 1536, 1536
      %32 = vsyncadd [#allocation5], %s31
      %s33 = sshll.u32 [#allocation4], 4
      %s34 = int_to_ptr.vmem [resolvable:$true] %s33
      %39 = dma.hbm_to_vmem [thread:$0]  %s3, 1536, %s34, [#allocation5], 128, 128, 8
    $region17: #{hrv_feature_embedder.1} parent=1 // pred_fallthru
      _
    // Predicated region
    $region18: #{hrv_feature_embedder.1} parent=1 // pred_check
      _
    $region19: #{hrv_feature_embedder.1} parent=1 // pred_check_branch
      %41 = sbr.rel (0) target = $region21
    $region20: #{hrv_feature_embedder.1} parent=1 // pred_region
      _
    $region21: #{hrv_feature_embedder.1} parent=1 // pred_fallthru
      _
    // Predicated region
    $region22: #{hrv_feature_embedder.1} parent=1 // pred_check
      _
    $region23: #{hrv_feature_embedder.1} parent=1 // pred_check_branch
      %43 = sbr.rel (0) target = $region25
    $region24: #{hrv_feature_embedder.1} parent=1 // pred_region
      %44 = dma.done [#allocation3], 1280
    $region25: #{hrv_feature_embedder.1} parent=1 // pred_fallthru
      _
    // Predicated region
    $region26: #{hrv_feature_embedder.1} parent=1 // pred_check
      _
    $region27: #{hrv_feature_embedder.1} parent=1 // pred_check_branch
      %46 = sbr.rel (0) target = $region29
    $region28: #{hrv_feature_embedder.1} parent=1 // pred_region
      %47 = dma.done [#allocation5], 1536
    $region29: #{hrv_feature_embedder.1} parent=1 // pred_fallthru
      _
    %v48 = vld [vmem:[%s0] sm:$0xff]
    %v49 = vld [vmem:[#allocation2] sm:$0xff]
    %v50 = vld [vmem:[#allocation2 + $0x8] sm:$0xff]
    %v51 = vld [vmem:[#allocation2 + $0x10] sm:$0xff]
    %v52 = vld [vmem:[#allocation2 + $0x18] sm:$0xff]
    %v53 = vld [vmem:[#allocation2 + $0x20] sm:$0xff]
    %v54 = vld [vmem:[#allocation2 + $0x28] sm:$0xff]
    %v55 = vld [vmem:[#allocation2 + $0x30] sm:$0xff]
    %v56 = vld [vmem:[#allocation2 + $0x38] sm:$0xff]
    %v57 = vld [vmem:[#allocation2 + $0x40] sm:$0xff]
    %v58 = vld [vmem:[#allocation2 + $0x48] sm:$0x3f]
    %v59 = vld [vmem:[%s2] sm:$0x1]
    %v61 = vlaneseq
    %v62 = vshrl.u32 %v61, 7
    %v63 = vsub.s32 0, %v62
    %v64 = vrot.slane %v59, %v63
    %vm66 = vcmask 637952
    %v68 = vsel %vm66, %v48, 0
    %vm70 = vcmask 1045504
    %v72 = vsel %vm70, %v58, 0
    %74 = vmatprep.subr.mxu0 0.0
    %v75 = vand.u32 %v49, 4294901760
    %76 = vmatpush1.msra.mxu0 %v75
    %77 = vmatprep.subr.mxu0 0.0
    %v78 = vand.u32 %v50, 4294901760
    %79 = vmatpush1.msra.mxu0 %v78
    %80 = vmatprep.subr.mxu0 0.0
    %v81 = vand.u32 %v51, 4294901760
    %82 = vmatpush1.msra.mxu0 %v81
    %83 = vmatprep.subr.mxu0 0.0
    %v84 = vand.u32 %v52, 4294901760
    %85 = vmatpush1.msra.mxu0 %v84
    %86 = vmatprep.subr.mxu0 0.0
    %v87 = vand.u32 %v53, 4294901760
    %88 = vmatpush1.msra.mxu0 %v87
    %89 = vmatprep.subr.mxu0 0.0
    %v90 = vand.u32 %v54, 4294901760
    %91 = vmatpush1.msra.mxu0 %v90
    %92 = vmatprep.subr.mxu0 0.0
    %v93 = vand.u32 %v55, 4294901760
    %94 = vmatpush1.msra.mxu0 %v93
    %95 = vmatprep.subr.mxu0 0.0
    %v96 = vand.u32 %v56, 4294901760
    %97 = vmatpush1.msra.mxu0 %v96
    %98 = vmatprep.subr.mxu0 0.0
    %v99 = vand.u32 %v57, 4294901760
    %100 = vmatpush1.msra.mxu0 %v99
    %101 = vmatprep.subr.mxu0 0.0
    %v102 = vand.u32 %v72, 4294901760
    %103 = vmatpush1.msra.mxu0 %v102
    %104 = vmatprep.subr.mxu0 0.0
    %105 = vmatpush1.msra.mxu0 0.0
    %106 = vmatprep.subr.mxu0 0.0
    %107 = vmatpush1.msra.mxu0 0.0
    %108 = vmatprep.subr.mxu0 0.0
    %109 = vmatpush1.msra.mxu0 0.0
    %110 = vmatprep.subr.mxu0 0.0
    %111 = vmatpush1.msra.mxu0 0.0
    %112 = vmatprep.subr.mxu0 0.0
    %113 = vmatpush1.msra.mxu0 0.0
    %114 = vmatprep.subr.mxu0 0.0
    %115 = vmatpush1.msra.mxu0 0.0
    %116 = vmatprep.subr.mxu0 0.0
    %117 = vmatpush1.msra.mxu0 0.0
    %118 = vmatprep.subr.mxu0 0.0
    %119 = vmatpush1.msra.mxu0 0.0
    %120 = vmatprep.subr.mxu0 0.0
    %121 = vmatpush1.msra.mxu0 0.0
    %122 = vmatprep.subr.mxu0 0.0
    %123 = vmatpush1.msra.mxu0 0.0
    %124 = vmatprep.subr.mxu0 0.0
    %125 = vmatpush1.msra.mxu0 0.0
    %126 = vmatprep.subr.mxu0 0.0
    %127 = vmatpush1.msra.mxu0 0.0
    %128 = vmatprep.subr.mxu0 0.0
    %129 = vmatpush1.msra.mxu0 0.0
    %130 = vmatprep.subr.mxu0 0.0
    %131 = vmatpush1.msra.mxu0 0.0
    %132 = vmatprep.subr.mxu0 0.0
    %133 = vmatpush1.msra.mxu0 0.0
    %134 = vmatprep.subr.mxu0 0.0
    %135 = vmatpush1.msra.mxu0 0.0
    %136 = vmatprep.subr.mxu0 0.0
    %137 = vmatpush1.msra.mxu0 0.0
    %138 = vmatprep.subr.mxu0 0.0
    %139 = vmatpush1.msra.mxu0 0.0
    %140 = vmatprep.subr.mxu0 0.0
    %141 = vmatpush1.msra.mxu0 0.0
    %142 = vmatprep.subr.mxu0 0.0
    %143 = vmatpush1.msra.mxu0 0.0
    %144 = vmatprep.subr.mxu0 0.0
    %145 = vmatpush1.msra.mxu0 0.0
    %146 = vmatprep.subr.mxu0 0.0
    %147 = vmatpush1.msra.mxu0 0.0
    %148 = vmatprep.mubr.f32.mxu0 0.0
    %v149 = vand.u32 %v68, 4294901760
    %v150 = vsub.f32 %v68, %v149
    %v151 = vand.u32 %v150, 4294901760
    %v152 = vsub.f32 %v150, %v151
    %v153 = vand.u32 %v152, 4294901760
    %154 = vmatmul.mubr.f32.gmra.mrb[0].mxu0 %v153
    %v155 = vpop.f32.mrb[0].mxu0
    %v156 = vadd.f32 %v64, %v155
    %v157 = vpop.f32.mrb[0].mxu0
    %158 = vdwg.mxu0
    %159 = vmatprep.subr.mxu0 0.0
    %v160 = vand.u32 %v49, 4294901760
    %v161 = vsub.f32 %v49, %v160
    %v162 = vand.u32 %v161, 4294901760
    %v163 = vsub.f32 %v161, %v162
    %v164 = vand.u32 %v163, 4294901760
    %165 = vmatpush1.msra.mxu0 %v164
    %166 = vmatprep.subr.mxu0 0.0
    %v167 = vand.u32 %v50, 4294901760
    %v168 = vsub.f32 %v50, %v167
    %v169 = vand.u32 %v168, 4294901760
    %v170 = vsub.f32 %v168, %v169
    %v171 = vand.u32 %v170, 4294901760
    %172 = vmatpush1.msra.mxu0 %v171
    %173 = vmatprep.subr.mxu0 0.0
    %v174 = vand.u32 %v51, 4294901760
    %v175 = vsub.f32 %v51, %v174
    %v176 = vand.u32 %v175, 4294901760
    %v177 = vsub.f32 %v175, %v176
    %v178 = vand.u32 %v177, 4294901760
    %179 = vmatpush1.msra.mxu0 %v178
    %180 = vmatprep.subr.mxu0 0.0
    %v181 = vand.u32 %v52, 4294901760
    %v182 = vsub.f32 %v52, %v181
    %v183 = vand.u32 %v182, 4294901760
    %v184 = vsub.f32 %v182, %v183
    %v185 = vand.u32 %v184, 4294901760
    %186 = vmatpush1.msra.mxu0 %v185
    %187 = vmatprep.subr.mxu0 0.0
    %v188 = vand.u32 %v53, 4294901760
    %v189 = vsub.f32 %v53, %v188
    %v190 = vand.u32 %v189, 4294901760
    %v191 = vsub.f32 %v189, %v190
    %v192 = vand.u32 %v191, 4294901760
    %193 = vmatpush1.msra.mxu0 %v192
    %194 = vmatprep.subr.mxu0 0.0
    %v195 = vand.u32 %v54, 4294901760
    %v196 = vsub.f32 %v54, %v195
    %v197 = vand.u32 %v196, 4294901760
    %v198 = vsub.f32 %v196, %v197
    %v199 = vand.u32 %v198, 4294901760
    %200 = vmatpush1.msra.mxu0 %v199
    %201 = vmatprep.subr.mxu0 0.0
    %v202 = vand.u32 %v55, 4294901760
    %v203 = vsub.f32 %v55, %v202
    %v204 = vand.u32 %v203, 4294901760
    %v205 = vsub.f32 %v203, %v204
    %v206 = vand.u32 %v205, 4294901760
    %207 = vmatpush1.msra.mxu0 %v206
    %208 = vmatprep.subr.mxu0 0.0
    %v209 = vand.u32 %v56, 4294901760
    %v210 = vsub.f32 %v56, %v209
    %v211 = vand.u32 %v210, 4294901760
    %v212 = vsub.f32 %v210, %v211
    %v213 = vand.u32 %v212, 4294901760
    %214 = vmatpush1.msra.mxu0 %v213
    %215 = vmatprep.subr.mxu0 0.0
    %v216 = vand.u32 %v57, 4294901760
    %v217 = vsub.f32 %v57, %v216
    %v218 = vand.u32 %v217, 4294901760
    %v219 = vsub.f32 %v217, %v218
    %v220 = vand.u32 %v219, 4294901760
    %221 = vmatpush1.msra.mxu0 %v220
    %222 = vmatprep.subr.mxu0 0.0
    %v223 = vand.u32 %v72, 4294901760
    %v224 = vsub.f32 %v72, %v223
    %v225 = vand.u32 %v224, 4294901760
    %v226 = vsub.f32 %v224, %v225
    %v227 = vand.u32 %v226, 4294901760
    %228 = vmatpush1.msra.mxu0 %v227
    %229 = vmatprep.subr.mxu0 0.0
    %230 = vmatpush1.msra.mxu0 0.0
    %231 = vmatprep.subr.mxu0 0.0
    %232 = vmatpush1.msra.mxu0 0.0
    %233 = vmatprep.subr.mxu0 0.0
    %234 = vmatpush1.msra.mxu0 0.0
    %235 = vmatprep.subr.mxu0 0.0
    %236 = vmatpush1.msra.mxu0 0.0
    %237 = vmatprep.subr.mxu0 0.0
    %238 = vmatpush1.msra.mxu0 0.0
    %239 = vmatprep.subr.mxu0 0.0
    %240 = vmatpush1.msra.mxu0 0.0
    %241 = vmatprep.subr.mxu0 0.0
    %242 = vmatpush1.msra.mxu0 0.0
    %243 = vmatprep.subr.mxu0 0.0
    %244 = vmatpush1.msra.mxu0 0.0
    %245 = vmatprep.subr.mxu0 0.0
    %246 = vmatpush1.msra.mxu0 0.0
    %247 = vmatprep.subr.mxu0 0.0
    %248 = vmatpush1.msra.mxu0 0.0
    %249 = vmatprep.subr.mxu0 0.0
    %250 = vmatpush1.msra.mxu0 0.0
    %251 = vmatprep.subr.mxu0 0.0
    %252 = vmatpush1.msra.mxu0 0.0
    %253 = vmatprep.subr.mxu0 0.0
    %254 = vmatpush1.msra.mxu0 0.0
    %255 = vmatprep.subr.mxu0 0.0
    %256 = vmatpush1.msra.mxu0 0.0
    %257 = vmatprep.subr.mxu0 0.0
    %258 = vmatpush1.msra.mxu0 0.0
    %259 = vmatprep.subr.mxu0 0.0
    %260 = vmatpush1.msra.mxu0 0.0
    %261 = vmatprep.subr.mxu0 0.0
    %262 = vmatpush1.msra.mxu0 0.0
    %263 = vmatprep.subr.mxu0 0.0
    %264 = vmatpush1.msra.mxu0 0.0
    %265 = vmatprep.subr.mxu0 0.0
    %266 = vmatpush1.msra.mxu0 0.0
    %267 = vmatprep.subr.mxu0 0.0
    %268 = vmatpush1.msra.mxu0 0.0
    %269 = vmatprep.subr.mxu0 0.0
    %270 = vmatpush1.msra.mxu0 0.0
    %271 = vmatprep.subr.mxu0 0.0
    %272 = vmatpush1.msra.mxu0 0.0
    %273 = vmatprep.mubr.f32.mxu0 0.0
    %v274 = vand.u32 %v68, 4294901760
    %275 = vmatmul.mubr.f32.gmra.mrb[0].mxu0 %v274
    %v276 = vpop.f32.mrb[0].mxu0
    %v277 = vadd.f32 %v156, %v276
    %v278 = vpop.f32.mrb[0].mxu0
    %279 = vdwg.mxu0
    %280 = vmatprep.subr.mxu0 0.0
    %v281 = vand.u32 %v49, 4294901760
    %v282 = vsub.f32 %v49, %v281
    %283 = vmatpush1.msra.mxu0 %v282
    %284 = vmatprep.subr.mxu0 0.0
    %v285 = vand.u32 %v50, 4294901760
    %v286 = vsub.f32 %v50, %v285
    %287 = vmatpush1.msra.mxu0 %v286
    %288 = vmatprep.subr.mxu0 0.0
    %v289 = vand.u32 %v51, 4294901760
    %v290 = vsub.f32 %v51, %v289
    %291 = vmatpush1.msra.mxu0 %v290
    %292 = vmatprep.subr.mxu0 0.0
    %v293 = vand.u32 %v52, 4294901760
    %v294 = vsub.f32 %v52, %v293
    %295 = vmatpush1.msra.mxu0 %v294
    %296 = vmatprep.subr.mxu0 0.0
    %v297 = vand.u32 %v53, 4294901760
    %v298 = vsub.f32 %v53, %v297
    %299 = vmatpush1.msra.mxu0 %v298
    %300 = vmatprep.subr.mxu0 0.0
    %v301 = vand.u32 %v54, 4294901760
    %v302 = vsub.f32 %v54, %v301
    %303 = vmatpush1.msra.mxu0 %v302
    %304 = vmatprep.subr.mxu0 0.0
    %v305 = vand.u32 %v55, 4294901760
    %v306 = vsub.f32 %v55, %v305
    %307 = vmatpush1.msra.mxu0 %v306
    %308 = vmatprep.subr.mxu0 0.0
    %v309 = vand.u32 %v56, 4294901760
    %v310 = vsub.f32 %v56, %v309
    %311 = vmatpush1.msra.mxu0 %v310
    %312 = vmatprep.subr.mxu0 0.0
    %v313 = vand.u32 %v57, 4294901760
    %v314 = vsub.f32 %v57, %v313
    %315 = vmatpush1.msra.mxu0 %v314
    %316 = vmatprep.subr.mxu0 0.0
    %v317 = vand.u32 %v72, 4294901760
    %v318 = vsub.f32 %v72, %v317
    %319 = vmatpush1.msra.mxu0 %v318
    %320 = vmatprep.subr.mxu0 0.0
    %321 = vmatpush1.msra.mxu0 0.0
    %322 = vmatprep.subr.mxu0 0.0
    %323 = vmatpush1.msra.mxu0 0.0
    %324 = vmatprep.subr.mxu0 0.0
    %325 = vmatpush1.msra.mxu0 0.0
    %326 = vmatprep.subr.mxu0 0.0
    %327 = vmatpush1.msra.mxu0 0.0
    %328 = vmatprep.subr.mxu0 0.0
    %329 = vmatpush1.msra.mxu0 0.0
    %330 = vmatprep.subr.mxu0 0.0
    %331 = vmatpush1.msra.mxu0 0.0
    %332 = vmatprep.subr.mxu0 0.0
    %333 = vmatpush1.msra.mxu0 0.0
    %334 = vmatprep.subr.mxu0 0.0
    %335 = vmatpush1.msra.mxu0 0.0
    %336 = vmatprep.subr.mxu0 0.0
    %337 = vmatpush1.msra.mxu0 0.0
    %338 = vmatprep.subr.mxu0 0.0
    %339 = vmatpush1.msra.mxu0 0.0
    %340 = vmatprep.subr.mxu0 0.0
    %341 = vmatpush1.msra.mxu0 0.0
    %342 = vmatprep.subr.mxu0 0.0
    %343 = vmatpush1.msra.mxu0 0.0
    %344 = vmatprep.subr.mxu0 0.0
    %345 = vmatpush1.msra.mxu0 0.0
    %346 = vmatprep.subr.mxu0 0.0
    %347 = vmatpush1.msra.mxu0 0.0
    %348 = vmatprep.subr.mxu0 0.0
    %349 = vmatpush1.msra.mxu0 0.0
    %350 = vmatprep.subr.mxu0 0.0
    %351 = vmatpush1.msra.mxu0 0.0
    %352 = vmatprep.subr.mxu0 0.0
    %353 = vmatpush1.msra.mxu0 0.0
    %354 = vmatprep.subr.mxu0 0.0
    %355 = vmatpush1.msra.mxu0 0.0
    %356 = vmatprep.subr.mxu0 0.0
    %357 = vmatpush1.msra.mxu0 0.0
    %358 = vmatprep.subr.mxu0 0.0
    %359 = vmatpush1.msra.mxu0 0.0
    %360 = vmatprep.subr.mxu0 0.0
    %361 = vmatpush1.msra.mxu0 0.0
    %362 = vmatprep.subr.mxu0 0.0
    %363 = vmatpush1.msra.mxu0 0.0
    %364 = vmatprep.mubr.f32.mxu0 0.0
    %v365 = vand.u32 %v68, 4294901760
    %v366 = vsub.f32 %v68, %v365
    %367 = vmatmul.mubr.f32.gmra.mrb[0].mxu0 %v366
    %v368 = vpop.f32.mrb[0].mxu0
    %v369 = vadd.f32 %v277, %v368
    %v370 = vpop.f32.mrb[0].mxu0
    %371 = vdwg.mxu0
    %372 = vmatprep.subr.mxu0 0.0
    %v373 = vand.u32 %v49, 4294901760
    %374 = vmatpush1.msra.mxu0 %v373
    %375 = vmatprep.subr.mxu0 0.0
    %v376 = vand.u32 %v50, 4294901760
    %377 = vmatpush1.msra.mxu0 %v376
    %378 = vmatprep.subr.mxu0 0.0
    %v379 = vand.u32 %v51, 4294901760
    %380 = vmatpush1.msra.mxu0 %v379
    %381 = vmatprep.subr.mxu0 0.0
    %v382 = vand.u32 %v52, 4294901760
    %383 = vmatpush1.msra.mxu0 %v382
    %384 = vmatprep.subr.mxu0 0.0
    %v385 = vand.u32 %v53, 4294901760
    %386 = vmatpush1.msra.mxu0 %v385
    %387 = vmatprep.subr.mxu0 0.0
    %v388 = vand.u32 %v54, 4294901760
    %389 = vmatpush1.msra.mxu0 %v388
    %390 = vmatprep.subr.mxu0 0.0
    %v391 = vand.u32 %v55, 4294901760
    %392 = vmatpush1.msra.mxu0 %v391
    %393 = vmatprep.subr.mxu0 0.0
    %v394 = vand.u32 %v56, 4294901760
    %395 = vmatpush1.msra.mxu0 %v394
    %396 = vmatprep.subr.mxu0 0.0
    %v397 = vand.u32 %v57, 4294901760
    %398 = vmatpush1.msra.mxu0 %v397
    %399 = vmatprep.subr.mxu0 0.0
    %v400 = vand.u32 %v72, 4294901760
    %401 = vmatpush1.msra.mxu0 %v400
    %402 = vmatprep.subr.mxu0 0.0
    %403 = vmatpush1.msra.mxu0 0.0
    %404 = vmatprep.subr.mxu0 0.0
    %405 = vmatpush1.msra.mxu0 0.0
    %406 = vmatprep.subr.mxu0 0.0
    %407 = vmatpush1.msra.mxu0 0.0
    %408 = vmatprep.subr.mxu0 0.0
    %409 = vmatpush1.msra.mxu0 0.0
    %410 = vmatprep.subr.mxu0 0.0
    %411 = vmatpush1.msra.mxu0 0.0
    %412 = vmatprep.subr.mxu0 0.0
    %413 = vmatpush1.msra.mxu0 0.0
    %414 = vmatprep.subr.mxu0 0.0
    %415 = vmatpush1.msra.mxu0 0.0
    %416 = vmatprep.subr.mxu0 0.0
    %417 = vmatpush1.msra.mxu0 0.0
    %418 = vmatprep.subr.mxu0 0.0
    %419 = vmatpush1.msra.mxu0 0.0
    %420 = vmatprep.subr.mxu0 0.0
    %421 = vmatpush1.msra.mxu0 0.0
    %422 = vmatprep.subr.mxu0 0.0
    %423 = vmatpush1.msra.mxu0 0.0
    %424 = vmatprep.subr.mxu0 0.0
    %425 = vmatpush1.msra.mxu0 0.0
    %426 = vmatprep.subr.mxu0 0.0
    %427 = vmatpush1.msra.mxu0 0.0
    %428 = vmatprep.subr.mxu0 0.0
    %429 = vmatpush1.msra.mxu0 0.0
    %430 = vmatprep.subr.mxu0 0.0
    %431 = vmatpush1.msra.mxu0 0.0
    %432 = vmatprep.subr.mxu0 0.0
    %433 = vmatpush1.msra.mxu0 0.0
    %434 = vmatprep.subr.mxu0 0.0
    %435 = vmatpush1.msra.mxu0 0.0
    %436 = vmatprep.subr.mxu0 0.0
    %437 = vmatpush1.msra.mxu0 0.0
    %438 = vmatprep.subr.mxu0 0.0
    %439 = vmatpush1.msra.mxu0 0.0
    %440 = vmatprep.subr.mxu0 0.0
    %441 = vmatpush1.msra.mxu0 0.0
    %442 = vmatprep.subr.mxu0 0.0
    %443 = vmatpush1.msra.mxu0 0.0
    %444 = vmatprep.subr.mxu0 0.0
    %445 = vmatpush1.msra.mxu0 0.0
    %446 = vmatprep.mubr.f32.mxu0 0.0
    %v447 = vand.u32 %v68, 4294901760
    %v448 = vsub.f32 %v68, %v447
    %v449 = vand.u32 %v448, 4294901760
    %450 = vmatmul.mubr.f32.gmra.mrb[0].mxu0 %v449
    %v451 = vpop.f32.mrb[0].mxu0
    %v452 = vadd.f32 %v369, %v451
    %v453 = vpop.f32.mrb[0].mxu0
    %454 = vdwg.mxu0
    %455 = vmatprep.subr.mxu0 0.0
    %v456 = vand.u32 %v49, 4294901760
    %v457 = vsub.f32 %v49, %v456
    %v458 = vand.u32 %v457, 4294901760
    %459 = vmatpush1.msra.mxu0 %v458
    %460 = vmatprep.subr.mxu0 0.0
    %v461 = vand.u32 %v50, 4294901760
    %v462 = vsub.f32 %v50, %v461
    %v463 = vand.u32 %v462, 4294901760
    %464 = vmatpush1.msra.mxu0 %v463
    %465 = vmatprep.subr.mxu0 0.0
    %v466 = vand.u32 %v51, 4294901760
    %v467 = vsub.f32 %v51, %v466
    %v468 = vand.u32 %v467, 4294901760
    %469 = vmatpush1.msra.mxu0 %v468
    %470 = vmatprep.subr.mxu0 0.0
    %v471 = vand.u32 %v52, 4294901760
    %v472 = vsub.f32 %v52, %v471
    %v473 = vand.u32 %v472, 4294901760
    %474 = vmatpush1.msra.mxu0 %v473
    %475 = vmatprep.subr.mxu0 0.0
    %v476 = vand.u32 %v53, 4294901760
    %v477 = vsub.f32 %v53, %v476
    %v478 = vand.u32 %v477, 4294901760
    %479 = vmatpush1.msra.mxu0 %v478
    %480 = vmatprep.subr.mxu0 0.0
    %v481 = vand.u32 %v54, 4294901760
    %v482 = vsub.f32 %v54, %v481
    %v483 = vand.u32 %v482, 4294901760
    %484 = vmatpush1.msra.mxu0 %v483
    %485 = vmatprep.subr.mxu0 0.0
    %v486 = vand.u32 %v55, 4294901760
    %v487 = vsub.f32 %v55, %v486
    %v488 = vand.u32 %v487, 4294901760
    %489 = vmatpush1.msra.mxu0 %v488
    %490 = vmatprep.subr.mxu0 0.0
    %v491 = vand.u32 %v56, 4294901760
    %v492 = vsub.f32 %v56, %v491
    %v493 = vand.u32 %v492, 4294901760
    %494 = vmatpush1.msra.mxu0 %v493
    %495 = vmatprep.subr.mxu0 0.0
    %v496 = vand.u32 %v57, 4294901760
    %v497 = vsub.f32 %v57, %v496
    %v498 = vand.u32 %v497, 4294901760
    %499 = vmatpush1.msra.mxu0 %v498
    %500 = vmatprep.subr.mxu0 0.0
    %v501 = vand.u32 %v72, 4294901760
    %v502 = vsub.f32 %v72, %v501
    %v503 = vand.u32 %v502, 4294901760
    %504 = vmatpush1.msra.mxu0 %v503
    %505 = vmatprep.subr.mxu0 0.0
    %506 = vmatpush1.msra.mxu0 0.0
    %507 = vmatprep.subr.mxu0 0.0
    %508 = vmatpush1.msra.mxu0 0.0
    %509 = vmatprep.subr.mxu0 0.0
    %510 = vmatpush1.msra.mxu0 0.0
    %511 = vmatprep.subr.mxu0 0.0
    %512 = vmatpush1.msra.mxu0 0.0
    %513 = vmatprep.subr.mxu0 0.0
    %514 = vmatpush1.msra.mxu0 0.0
    %515 = vmatprep.subr.mxu0 0.0
    %516 = vmatpush1.msra.mxu0 0.0
    %517 = vmatprep.subr.mxu0 0.0
    %518 = vmatpush1.msra.mxu0 0.0
    %519 = vmatprep.subr.mxu0 0.0
    %520 = vmatpush1.msra.mxu0 0.0
    %521 = vmatprep.subr.mxu0 0.0
    %522 = vmatpush1.msra.mxu0 0.0
    %523 = vmatprep.subr.mxu0 0.0
    %524 = vmatpush1.msra.mxu0 0.0
    %525 = vmatprep.subr.mxu0 0.0
    %526 = vmatpush1.msra.mxu0 0.0
    %527 = vmatprep.subr.mxu0 0.0
    %528 = vmatpush1.msra.mxu0 0.0
    %529 = vmatprep.subr.mxu0 0.0
    %530 = vmatpush1.msra.mxu0 0.0
    %531 = vmatprep.subr.mxu0 0.0
    %532 = vmatpush1.msra.mxu0 0.0
    %533 = vmatprep.subr.mxu0 0.0
    %534 = vmatpush1.msra.mxu0 0.0
    %535 = vmatprep.subr.mxu0 0.0
    %536 = vmatpush1.msra.mxu0 0.0
    %537 = vmatprep.subr.mxu0 0.0
    %538 = vmatpush1.msra.mxu0 0.0
    %539 = vmatprep.subr.mxu0 0.0
    %540 = vmatpush1.msra.mxu0 0.0
    %541 = vmatprep.subr.mxu0 0.0
    %542 = vmatpush1.msra.mxu0 0.0
    %543 = vmatprep.subr.mxu0 0.0
    %544 = vmatpush1.msra.mxu0 0.0
    %545 = vmatprep.subr.mxu0 0.0
    %546 = vmatpush1.msra.mxu0 0.0
    %547 = vmatprep.subr.mxu0 0.0
    %548 = vmatpush1.msra.mxu0 0.0
    %549 = vmatprep.mubr.f32.mxu0 0.0
    %v550 = vand.u32 %v68, 4294901760
    %551 = vmatmul.mubr.f32.gmra.mrb[0].mxu0 %v550
    %v552 = vpop.f32.mrb[0].mxu0
    %v553 = vadd.f32 %v452, %v552
    %v554 = vpop.f32.mrb[0].mxu0
    %555 = vdwg.mxu0
    %556 = vmatprep.subr.mxu0 0.0
    %v557 = vand.u32 %v49, 4294901760
    %558 = vmatpush1.msra.mxu0 %v557
    %559 = vmatprep.subr.mxu0 0.0
    %v560 = vand.u32 %v50, 4294901760
    %561 = vmatpush1.msra.mxu0 %v560
    %562 = vmatprep.subr.mxu0 0.0
    %v563 = vand.u32 %v51, 4294901760
    %564 = vmatpush1.msra.mxu0 %v563
    %565 = vmatprep.subr.mxu0 0.0
    %v566 = vand.u32 %v52, 4294901760
    %567 = vmatpush1.msra.mxu0 %v566
    %568 = vmatprep.subr.mxu0 0.0
    %v569 = vand.u32 %v53, 4294901760
    %570 = vmatpush1.msra.mxu0 %v569
    %571 = vmatprep.subr.mxu0 0.0
    %v572 = vand.u32 %v54, 4294901760
    %573 = vmatpush1.msra.mxu0 %v572
    %574 = vmatprep.subr.mxu0 0.0
    %v575 = vand.u32 %v55, 4294901760
    %576 = vmatpush1.msra.mxu0 %v575
    %577 = vmatprep.subr.mxu0 0.0
    %v578 = vand.u32 %v56, 4294901760
    %579 = vmatpush1.msra.mxu0 %v578
    %580 = vmatprep.subr.mxu0 0.0
    %v581 = vand.u32 %v57, 4294901760
    %582 = vmatpush1.msra.mxu0 %v581
    %583 = vmatprep.subr.mxu0 0.0
    %v584 = vand.u32 %v72, 4294901760
    %585 = vmatpush1.msra.mxu0 %v584
    %586 = vmatprep.subr.mxu0 0.0
    %587 = vmatpush1.msra.mxu0 0.0
    %588 = vmatprep.subr.mxu0 0.0
    %589 = vmatpush1.msra.mxu0 0.0
    %590 = vmatprep.subr.mxu0 0.0
    %591 = vmatpush1.msra.mxu0 0.0
    %592 = vmatprep.subr.mxu0 0.0
    %593 = vmatpush1.msra.mxu0 0.0
    %594 = vmatprep.subr.mxu0 0.0
    %595 = vmatpush1.msra.mxu0 0.0
    %596 = vmatprep.subr.mxu0 0.0
    %597 = vmatpush1.msra.mxu0 0.0
    %598 = vmatprep.subr.mxu0 0.0
    %599 = vmatpush1.msra.mxu0 0.0
    %600 = vmatprep.subr.mxu0 0.0
    %601 = vmatpush1.msra.mxu0 0.0
    %602 = vmatprep.subr.mxu0 0.0
    %603 = vmatpush1.msra.mxu0 0.0
    %604 = vmatprep.subr.mxu0 0.0
    %605 = vmatpush1.msra.mxu0 0.0
    %606 = vmatprep.subr.mxu0 0.0
    %607 = vmatpush1.msra.mxu0 0.0
    %608 = vmatprep.subr.mxu0 0.0
    %609 = vmatpush1.msra.mxu0 0.0
    %610 = vmatprep.subr.mxu0 0.0
    %611 = vmatpush1.msra.mxu0 0.0
    %612 = vmatprep.subr.mxu0 0.0
    %613 = vmatpush1.msra.mxu0 0.0
    %614 = vmatprep.subr.mxu0 0.0
    %615 = vmatpush1.msra.mxu0 0.0
    %616 = vmatprep.subr.mxu0 0.0
    %617 = vmatpush1.msra.mxu0 0.0
    %618 = vmatprep.subr.mxu0 0.0
    %619 = vmatpush1.msra.mxu0 0.0
    %620 = vmatprep.subr.mxu0 0.0
    %621 = vmatpush1.msra.mxu0 0.0
    %622 = vmatprep.subr.mxu0 0.0
    %623 = vmatpush1.msra.mxu0 0.0
    %624 = vmatprep.subr.mxu0 0.0
    %625 = vmatpush1.msra.mxu0 0.0
    %626 = vmatprep.subr.mxu0 0.0
    %627 = vmatpush1.msra.mxu0 0.0
    %628 = vmatprep.subr.mxu0 0.0
    %629 = vmatpush1.msra.mxu0 0.0
    %630 = vmatprep.mubr.f32.mxu0 0.0
    %v631 = vand.u32 %v68, 4294901760
    %632 = vmatmul.mubr.f32.gmra.mrb[0].mxu0 %v631
    %v633 = vpop.f32.mrb[0].mxu0
    %v634 = vadd.f32 %v553, %v633
    %v635 = vpop.f32.mrb[0].mxu0
    %636 = vdwg.mxu0
    %v637 = vmax.f32 %v634, 0.0
    %v638 = vld [vmem:[#allocation4] sm:$0xff]
    %v639 = vld [vmem:[#allocation4 + $0x8] sm:$0xff]
    %v640 = vld [vmem:[#allocation4 + $0x10] sm:$0xff]
    %v641 = vld [vmem:[#allocation4 + $0x18] sm:$0xff]
    %v642 = vld [vmem:[#allocation4 + $0x20] sm:$0xff]
    %v643 = vld [vmem:[#allocation4 + $0x28] sm:$0xff]
    %v644 = vld [vmem:[#allocation4 + $0x30] sm:$0xff]
    %v645 = vld [vmem:[#allocation4 + $0x38] sm:$0xff]
    %v646 = vld [vmem:[#allocation4 + $0x40] sm:$0xff]
    %v647 = vld [vmem:[#allocation4 + $0x48] sm:$0xff]
    %v648 = vld [vmem:[#allocation4 + $0x50] sm:$0xff]
    %v649 = vld [vmem:[#allocation4 + $0x58] sm:$0xff]
    %v650 = vld [vmem:[%s4] sm:$0x1]
    %v652 = vlaneseq
    %v653 = vshrl.u32 %v652, 7
    %v654 = vsub.s32 0, %v653
    %v655 = vrot.slane %v650, %v654
    %vm657 = vcmask 785408
    %v659 = vsel %vm657, %v637, 0
    %661 = vmatprep.subr.mxu0 0.0
    %v662 = vand.u32 %v638, 4294901760
    %663 = vmatpush1.msra.mxu0 %v662
    %664 = vmatprep.subr.mxu0 0.0
    %v665 = vand.u32 %v639, 4294901760
    %666 = vmatpush1.msra.mxu0 %v665
    %667 = vmatprep.subr.mxu0 0.0
    %v668 = vand.u32 %v640, 4294901760
    %669 = vmatpush1.msra.mxu0 %v668
    %670 = vmatprep.subr.mxu0 0.0
    %v671 = vand.u32 %v641, 4294901760
    %672 = vmatpush1.msra.mxu0 %v671
    %673 = vmatprep.subr.mxu0 0.0
    %v674 = vand.u32 %v642, 4294901760
    %675 = vmatpush1.msra.mxu0 %v674
    %676 = vmatprep.subr.mxu0 0.0
    %v677 = vand.u32 %v643, 4294901760
    %678 = vmatpush1.msra.mxu0 %v677
    %679 = vmatprep.subr.mxu0 0.0
    %v680 = vand.u32 %v644, 4294901760
    %681 = vmatpush1.msra.mxu0 %v680
    %682 = vmatprep.subr.mxu0 0.0
    %v683 = vand.u32 %v645, 4294901760
    %684 = vmatpush1.msra.mxu0 %v683
    %685 = vmatprep.subr.mxu0 0.0
    %v686 = vand.u32 %v646, 4294901760
    %687 = vmatpush1.msra.mxu0 %v686
    %688 = vmatprep.subr.mxu0 0.0
    %v689 = vand.u32 %v647, 4294901760
    %690 = vmatpush1.msra.mxu0 %v689
    %691 = vmatprep.subr.mxu0 0.0
    %v692 = vand.u32 %v648, 4294901760
    %693 = vmatpush1.msra.mxu0 %v692
    %694 = vmatprep.subr.mxu0 0.0
    %v695 = vand.u32 %v649, 4294901760
    %696 = vmatpush1.msra.mxu0 %v695
    %697 = vmatprep.subr.mxu0 0.0
    %698 = vmatpush1.msra.mxu0 0.0
    %699 = vmatprep.subr.mxu0 0.0
    %700 = vmatpush1.msra.mxu0 0.0
    %701 = vmatprep.subr.mxu0 0.0
    %702 = vmatpush1.msra.mxu0 0.0
    %703 = vmatprep.subr.mxu0 0.0
    %704 = vmatpush1.msra.mxu0 0.0
    %705 = vmatprep.subr.mxu0 0.0
    %706 = vmatpush1.msra.mxu0 0.0
    %707 = vmatprep.subr.mxu0 0.0
    %708 = vmatpush1.msra.mxu0 0.0
    %709 = vmatprep.subr.mxu0 0.0
    %710 = vmatpush1.msra.mxu0 0.0
    %711 = vmatprep.subr.mxu0 0.0
    %712 = vmatpush1.msra.mxu0 0.0
    %713 = vmatprep.subr.mxu0 0.0
    %714 = vmatpush1.msra.mxu0 0.0
    %715 = vmatprep.subr.mxu0 0.0
    %716 = vmatpush1.msra.mxu0 0.0
    %717 = vmatprep.subr.mxu0 0.0
    %718 = vmatpush1.msra.mxu0 0.0
    %719 = vmatprep.subr.mxu0 0.0
    %720 = vmatpush1.msra.mxu0 0.0
    %721 = vmatprep.subr.mxu0 0.0
    %722 = vmatpush1.msra.mxu0 0.0
    %723 = vmatprep.subr.mxu0 0.0
    %724 = vmatpush1.msra.mxu0 0.0
    %725 = vmatprep.subr.mxu0 0.0
    %726 = vmatpush1.msra.mxu0 0.0
    %727 = vmatprep.subr.mxu0 0.0
    %728 = vmatpush1.msra.mxu0 0.0
    %729 = vmatprep.subr.mxu0 0.0
    %730 = vmatpush1.msra.mxu0 0.0
    %731 = vmatprep.subr.mxu0 0.0
    %732 = vmatpush1.msra.mxu0 0.0
    %733 = vmatprep.subr.mxu0 0.0
    %734 = vmatpush1.msra.mxu0 0.0
    %735 = vmatprep.subr.mxu0 0.0
    %736 = vmatpush1.msra.mxu0 0.0
    %737 = vmatprep.mubr.f32.mxu0 0.0
    %v738 = vand.u32 %v659, 4294901760
    %v739 = vsub.f32 %v659, %v738
    %v740 = vand.u32 %v739, 4294901760
    %v741 = vsub.f32 %v739, %v740
    %v742 = vand.u32 %v741, 4294901760
    %743 = vmatmul.mubr.f32.gmra.mrb[0].mxu0 %v742
    %v744 = vpop.f32.mrb[0].mxu0
    %v745 = vadd.f32 %v655, %v744
    %v746 = vpop.f32.mrb[0].mxu0
    %747 = vdwg.mxu0
    %748 = vmatprep.subr.mxu0 0.0
    %v749 = vand.u32 %v638, 4294901760
    %v750 = vsub.f32 %v638, %v749
    %v751 = vand.u32 %v750, 4294901760
    %v752 = vsub.f32 %v750, %v751
    %v753 = vand.u32 %v752, 4294901760
    %754 = vmatpush1.msra.mxu0 %v753
    %755 = vmatprep.subr.mxu0 0.0
    %v756 = vand.u32 %v639, 4294901760
    %v757 = vsub.f32 %v639, %v756
    %v758 = vand.u32 %v757, 4294901760
    %v759 = vsub.f32 %v757, %v758
    %v760 = vand.u32 %v759, 4294901760
    %761 = vmatpush1.msra.mxu0 %v760
    %762 = vmatprep.subr.mxu0 0.0
    %v763 = vand.u32 %v640, 4294901760
    %v764 = vsub.f32 %v640, %v763
    %v765 = vand.u32 %v764, 4294901760
    %v766 = vsub.f32 %v764, %v765
    %v767 = vand.u32 %v766, 4294901760
    %768 = vmatpush1.msra.mxu0 %v767
    %769 = vmatprep.subr.mxu0 0.0
    %v770 = vand.u32 %v641, 4294901760
    %v771 = vsub.f32 %v641, %v770
    %v772 = vand.u32 %v771, 4294901760
    %v773 = vsub.f32 %v771, %v772
    %v774 = vand.u32 %v773, 4294901760
    %775 = vmatpush1.msra.mxu0 %v774
    %776 = vmatprep.subr.mxu0 0.0
    %v777 = vand.u32 %v642, 4294901760
    %v778 = vsub.f32 %v642, %v777
    %v779 = vand.u32 %v778, 4294901760
    %v780 = vsub.f32 %v778, %v779
    %v781 = vand.u32 %v780, 4294901760
    %782 = vmatpush1.msra.mxu0 %v781
    %783 = vmatprep.subr.mxu0 0.0
    %v784 = vand.u32 %v643, 4294901760
    %v785 = vsub.f32 %v643, %v784
    %v786 = vand.u32 %v785, 4294901760
    %v787 = vsub.f32 %v785, %v786
    %v788 = vand.u32 %v787, 4294901760
    %789 = vmatpush1.msra.mxu0 %v788
    %790 = vmatprep.subr.mxu0 0.0
    %v791 = vand.u32 %v644, 4294901760
    %v792 = vsub.f32 %v644, %v791
    %v793 = vand.u32 %v792, 4294901760
    %v794 = vsub.f32 %v792, %v793
    %v795 = vand.u32 %v794, 4294901760
    %796 = vmatpush1.msra.mxu0 %v795
    %797 = vmatprep.subr.mxu0 0.0
    %v798 = vand.u32 %v645, 4294901760
    %v799 = vsub.f32 %v645, %v798
    %v800 = vand.u32 %v799, 4294901760
    %v801 = vsub.f32 %v799, %v800
    %v802 = vand.u32 %v801, 4294901760
    %803 = vmatpush1.msra.mxu0 %v802
    %804 = vmatprep.subr.mxu0 0.0
    %v805 = vand.u32 %v646, 4294901760
    %v806 = vsub.f32 %v646, %v805
    %v807 = vand.u32 %v806, 4294901760
    %v808 = vsub.f32 %v806, %v807
    %v809 = vand.u32 %v808, 4294901760
    %810 = vmatpush1.msra.mxu0 %v809
    %811 = vmatprep.subr.mxu0 0.0
    %v812 = vand.u32 %v647, 4294901760
    %v813 = vsub.f32 %v647, %v812
    %v814 = vand.u32 %v813, 4294901760
    %v815 = vsub.f32 %v813, %v814
    %v816 = vand.u32 %v815, 4294901760
    %817 = vmatpush1.msra.mxu0 %v816
    %818 = vmatprep.subr.mxu0 0.0
    %v819 = vand.u32 %v648, 4294901760
    %v820 = vsub.f32 %v648, %v819
    %v821 = vand.u32 %v820, 4294901760
    %v822 = vsub.f32 %v820, %v821
    %v823 = vand.u32 %v822, 4294901760
    %824 = vmatpush1.msra.mxu0 %v823
    %825 = vmatprep.subr.mxu0 0.0
    %v826 = vand.u32 %v649, 4294901760
    %v827 = vsub.f32 %v649, %v826
    %v828 = vand.u32 %v827, 4294901760
    %v829 = vsub.f32 %v827, %v828
    %v830 = vand.u32 %v829, 4294901760
    %831 = vmatpush1.msra.mxu0 %v830
    %832 = vmatprep.subr.mxu0 0.0
    %833 = vmatpush1.msra.mxu0 0.0
    %834 = vmatprep.subr.mxu0 0.0
    %835 = vmatpush1.msra.mxu0 0.0
    %836 = vmatprep.subr.mxu0 0.0
    %837 = vmatpush1.msra.mxu0 0.0
    %838 = vmatprep.subr.mxu0 0.0
    %839 = vmatpush1.msra.mxu0 0.0
    %840 = vmatprep.subr.mxu0 0.0
    %841 = vmatpush1.msra.mxu0 0.0
    %842 = vmatprep.subr.mxu0 0.0
    %843 = vmatpush1.msra.mxu0 0.0
    %844 = vmatprep.subr.mxu0 0.0
    %845 = vmatpush1.msra.mxu0 0.0
    %846 = vmatprep.subr.mxu0 0.0
    %847 = vmatpush1.msra.mxu0 0.0
    %848 = vmatprep.subr.mxu0 0.0
    %849 = vmatpush1.msra.mxu0 0.0
    %850 = vmatprep.subr.mxu0 0.0
    %851 = vmatpush1.msra.mxu0 0.0
    %852 = vmatprep.subr.mxu0 0.0
    %853 = vmatpush1.msra.mxu0 0.0
    %854 = vmatprep.subr.mxu0 0.0
    %855 = vmatpush1.msra.mxu0 0.0
    %856 = vmatprep.subr.mxu0 0.0
    %857 = vmatpush1.msra.mxu0 0.0
    %858 = vmatprep.subr.mxu0 0.0
    %859 = vmatpush1.msra.mxu0 0.0
    %860 = vmatprep.subr.mxu0 0.0
    %861 = vmatpush1.msra.mxu0 0.0
    %862 = vmatprep.subr.mxu0 0.0
    %863 = vmatpush1.msra.mxu0 0.0
    %864 = vmatprep.subr.mxu0 0.0
    %865 = vmatpush1.msra.mxu0 0.0
    %866 = vmatprep.subr.mxu0 0.0
    %867 = vmatpush1.msra.mxu0 0.0
    %868 = vmatprep.subr.mxu0 0.0
    %869 = vmatpush1.msra.mxu0 0.0
    %870 = vmatprep.subr.mxu0 0.0
    %871 = vmatpush1.msra.mxu0 0.0
    %872 = vmatprep.mubr.f32.mxu0 0.0
    %v873 = vand.u32 %v659, 4294901760
    %874 = vmatmul.mubr.f32.gmra.mrb[0].mxu0 %v873
    %v875 = vpop.f32.mrb[0].mxu0
    %v876 = vadd.f32 %v745, %v875
    %v877 = vpop.f32.mrb[0].mxu0
    %878 = vdwg.mxu0
    %879 = vmatprep.subr.mxu0 0.0
    %v880 = vand.u32 %v638, 4294901760
    %v881 = vsub.f32 %v638, %v880
    %882 = vmatpush1.msra.mxu0 %v881
    %883 = vmatprep.subr.mxu0 0.0
    %v884 = vand.u32 %v639, 4294901760
    %v885 = vsub.f32 %v639, %v884
    %886 = vmatpush1.msra.mxu0 %v885
    %887 = vmatprep.subr.mxu0 0.0
    %v888 = vand.u32 %v640, 4294901760
    %v889 = vsub.f32 %v640, %v888
    %890 = vmatpush1.msra.mxu0 %v889
    %891 = vmatprep.subr.mxu0 0.0
    %v892 = vand.u32 %v641, 4294901760
    %v893 = vsub.f32 %v641, %v892
    %894 = vmatpush1.msra.mxu0 %v893
    %895 = vmatprep.subr.mxu0 0.0
    %v896 = vand.u32 %v642, 4294901760
    %v897 = vsub.f32 %v642, %v896
    %898 = vmatpush1.msra.mxu0 %v897
    %899 = vmatprep.subr.mxu0 0.0
    %v900 = vand.u32 %v643, 4294901760
    %v901 = vsub.f32 %v643, %v900
    %902 = vmatpush1.msra.mxu0 %v901
    %903 = vmatprep.subr.mxu0 0.0
    %v904 = vand.u32 %v644, 4294901760
    %v905 = vsub.f32 %v644, %v904
    %906 = vmatpush1.msra.mxu0 %v905
    %907 = vmatprep.subr.mxu0 0.0
    %v908 = vand.u32 %v645, 4294901760
    %v909 = vsub.f32 %v645, %v908
    %910 = vmatpush1.msra.mxu0 %v909
    %911 = vmatprep.subr.mxu0 0.0
    %v912 = vand.u32 %v646, 4294901760
    %v913 = vsub.f32 %v646, %v912
    %914 = vmatpush1.msra.mxu0 %v913
    %915 = vmatprep.subr.mxu0 0.0
    %v916 = vand.u32 %v647, 4294901760
    %v917 = vsub.f32 %v647, %v916
    %918 = vmatpush1.msra.mxu0 %v917
    %919 = vmatprep.subr.mxu0 0.0
    %v920 = vand.u32 %v648, 4294901760
    %v921 = vsub.f32 %v648, %v920
    %922 = vmatpush1.msra.mxu0 %v921
    %923 = vmatprep.subr.mxu0 0.0
    %v924 = vand.u32 %v649, 4294901760
    %v925 = vsub.f32 %v649, %v924
    %926 = vmatpush1.msra.mxu0 %v925
    %927 = vmatprep.subr.mxu0 0.0
    %928 = vmatpush1.msra.mxu0 0.0
    %929 = vmatprep.subr.mxu0 0.0
    %930 = vmatpush1.msra.mxu0 0.0
    %931 = vmatprep.subr.mxu0 0.0
    %932 = vmatpush1.msra.mxu0 0.0
    %933 = vmatprep.subr.mxu0 0.0
    %934 = vmatpush1.msra.mxu0 0.0
    %935 = vmatprep.subr.mxu0 0.0
    %936 = vmatpush1.msra.mxu0 0.0
    %937 = vmatprep.subr.mxu0 0.0
    %938 = vmatpush1.msra.mxu0 0.0
    %939 = vmatprep.subr.mxu0 0.0
    %940 = vmatpush1.msra.mxu0 0.0
    %941 = vmatprep.subr.mxu0 0.0
    %942 = vmatpush1.msra.mxu0 0.0
    %943 = vmatprep.subr.mxu0 0.0
    %944 = vmatpush1.msra.mxu0 0.0
    %945 = vmatprep.subr.mxu0 0.0
    %946 = vmatpush1.msra.mxu0 0.0
    %947 = vmatprep.subr.mxu0 0.0
    %948 = vmatpush1.msra.mxu0 0.0
    %949 = vmatprep.subr.mxu0 0.0
    %950 = vmatpush1.msra.mxu0 0.0
    %951 = vmatprep.subr.mxu0 0.0
    %952 = vmatpush1.msra.mxu0 0.0
    %953 = vmatprep.subr.mxu0 0.0
    %954 = vmatpush1.msra.mxu0 0.0
    %955 = vmatprep.subr.mxu0 0.0
    %956 = vmatpush1.msra.mxu0 0.0
    %957 = vmatprep.subr.mxu0 0.0
    %958 = vmatpush1.msra.mxu0 0.0
    %959 = vmatprep.subr.mxu0 0.0
    %960 = vmatpush1.msra.mxu0 0.0
    %961 = vmatprep.subr.mxu0 0.0
    %962 = vmatpush1.msra.mxu0 0.0
    %963 = vmatprep.subr.mxu0 0.0
    %964 = vmatpush1.msra.mxu0 0.0
    %965 = vmatprep.subr.mxu0 0.0
    %966 = vmatpush1.msra.mxu0 0.0
    %967 = vmatprep.mubr.f32.mxu0 0.0
    %v968 = vand.u32 %v659, 4294901760
    %v969 = vsub.f32 %v659, %v968
    %970 = vmatmul.mubr.f32.gmra.mrb[0].mxu0 %v969
    %v971 = vpop.f32.mrb[0].mxu0
    %v972 = vadd.f32 %v876, %v971
    %v973 = vpop.f32.mrb[0].mxu0
    %974 = vdwg.mxu0
    %975 = vmatprep.subr.mxu0 0.0
    %v976 = vand.u32 %v638, 4294901760
    %977 = vmatpush1.msra.mxu0 %v976
    %978 = vmatprep.subr.mxu0 0.0
    %v979 = vand.u32 %v639, 4294901760
    %980 = vmatpush1.msra.mxu0 %v979
    %981 = vmatprep.subr.mxu0 0.0
    %v982 = vand.u32 %v640, 4294901760
    %983 = vmatpush1.msra.mxu0 %v982
    %984 = vmatprep.subr.mxu0 0.0
    %v985 = vand.u32 %v641, 4294901760
    %986 = vmatpush1.msra.mxu0 %v985
    %987 = vmatprep.subr.mxu0 0.0
    %v988 = vand.u32 %v642, 4294901760
    %989 = vmatpush1.msra.mxu0 %v988
    %990 = vmatprep.subr.mxu0 0.0
    %v991 = vand.u32 %v643, 4294901760
    %992 = vmatpush1.msra.mxu0 %v991
    %993 = vmatprep.subr.mxu0 0.0
    %v994 = vand.u32 %v644, 4294901760
    %995 = vmatpush1.msra.mxu0 %v994
    %996 = vmatprep.subr.mxu0 0.0
    %v997 = vand.u32 %v645, 4294901760
    %998 = vmatpush1.msra.mxu0 %v997
    %999 = vmatprep.subr.mxu0 0.0
    %v1000 = vand.u32 %v646, 4294901760
    %1001 = vmatpush1.msra.mxu0 %v1000
    %1002 = vmatprep.subr.mxu0 0.0
    %v1003 = vand.u32 %v647, 4294901760
    %1004 = vmatpush1.msra.mxu0 %v1003
    %1005 = vmatprep.subr.mxu0 0.0
    %v1006 = vand.u32 %v648, 4294901760
    %1007 = vmatpush1.msra.mxu0 %v1006
    %1008 = vmatprep.subr.mxu0 0.0
    %v1009 = vand.u32 %v649, 4294901760
    %1010 = vmatpush1.msra.mxu0 %v1009
    %1011 = vmatprep.subr.mxu0 0.0
    %1012 = vmatpush1.msra.mxu0 0.0
    %1013 = vmatprep.subr.mxu0 0.0
    %1014 = vmatpush1.msra.mxu0 0.0
    %1015 = vmatprep.subr.mxu0 0.0
    %1016 = vmatpush1.msra.mxu0 0.0
    %1017 = vmatprep.subr.mxu0 0.0
    %1018 = vmatpush1.msra.mxu0 0.0
    %1019 = vmatprep.subr.mxu0 0.0
    %1020 = vmatpush1.msra.mxu0 0.0
    %1021 = vmatprep.subr.mxu0 0.0
    %1022 = vmatpush1.msra.mxu0 0.0
    %1023 = vmatprep.subr.mxu0 0.0
    %1024 = vmatpush1.msra.mxu0 0.0
    %1025 = vmatprep.subr.mxu0 0.0
    %1026 = vmatpush1.msra.mxu0 0.0
    %1027 = vmatprep.subr.mxu0 0.0
    %1028 = vmatpush1.msra.mxu0 0.0
    %1029 = vmatprep.subr.mxu0 0.0
    %1030 = vmatpush1.msra.mxu0 0.0
    %1031 = vmatprep.subr.mxu0 0.0
    %1032 = vmatpush1.msra.mxu0 0.0
    %1033 = vmatprep.subr.mxu0 0.0
    %1034 = vmatpush1.msra.mxu0 0.0
    %1035 = vmatprep.subr.mxu0 0.0
    %1036 = vmatpush1.msra.mxu0 0.0
    %1037 = vmatprep.subr.mxu0 0.0
    %1038 = vmatpush1.msra.mxu0 0.0
    %1039 = vmatprep.subr.mxu0 0.0
    %1040 = vmatpush1.msra.mxu0 0.0
    %1041 = vmatprep.subr.mxu0 0.0
    %1042 = vmatpush1.msra.mxu0 0.0
    %1043 = vmatprep.subr.mxu0 0.0
    %1044 = vmatpush1.msra.mxu0 0.0
    %1045 = vmatprep.subr.mxu0 0.0
    %1046 = vmatpush1.msra.mxu0 0.0
    %1047 = vmatprep.subr.mxu0 0.0
    %1048 = vmatpush1.msra.mxu0 0.0
    %1049 = vmatprep.subr.mxu0 0.0
    %1050 = vmatpush1.msra.mxu0 0.0
    %1051 = vmatprep.mubr.f32.mxu0 0.0
    %v1052 = vand.u32 %v659, 4294901760
    %v1053 = vsub.f32 %v659, %v1052
    %v1054 = vand.u32 %v1053, 4294901760
    %1055 = vmatmul.mubr.f32.gmra.mrb[0].mxu0 %v1054
    %v1056 = vpop.f32.mrb[0].mxu0
    %v1057 = vadd.f32 %v972, %v1056
    %v1058 = vpop.f32.mrb[0].mxu0
    %1059 = vdwg.mxu0
    %1060 = vmatprep.subr.mxu0 0.0
    %v1061 = vand.u32 %v638, 4294901760
    %v1062 = vsub.f32 %v638, %v1061
    %v1063 = vand.u32 %v1062, 4294901760
    %1064 = vmatpush1.msra.mxu0 %v1063
    %1065 = vmatprep.subr.mxu0 0.0
    %v1066 = vand.u32 %v639, 4294901760
    %v1067 = vsub.f32 %v639, %v1066
    %v1068 = vand.u32 %v1067, 4294901760
    %1069 = vmatpush1.msra.mxu0 %v1068
    %1070 = vmatprep.subr.mxu0 0.0
    %v1071 = vand.u32 %v640, 4294901760
    %v1072 = vsub.f32 %v640, %v1071
    %v1073 = vand.u32 %v1072, 4294901760
    %1074 = vmatpush1.msra.mxu0 %v1073
    %1075 = vmatprep.subr.mxu0 0.0
    %v1076 = vand.u32 %v641, 4294901760
    %v1077 = vsub.f32 %v641, %v1076
    %v1078 = vand.u32 %v1077, 4294901760
    %1079 = vmatpush1.msra.mxu0 %v1078
    %1080 = vmatprep.subr.mxu0 0.0
    %v1081 = vand.u32 %v642, 4294901760
    %v1082 = vsub.f32 %v642, %v1081
    %v1083 = vand.u32 %v1082, 4294901760
    %1084 = vmatpush1.msra.mxu0 %v1083
    %1085 = vmatprep.subr.mxu0 0.0
    %v1086 = vand.u32 %v643, 4294901760
    %v1087 = vsub.f32 %v643, %v1086
    %v1088 = vand.u32 %v1087, 4294901760
    %1089 = vmatpush1.msra.mxu0 %v1088
    %1090 = vmatprep.subr.mxu0 0.0
    %v1091 = vand.u32 %v644, 4294901760
    %v1092 = vsub.f32 %v644, %v1091
    %v1093 = vand.u32 %v1092, 4294901760
    %1094 = vmatpush1.msra.mxu0 %v1093
    %1095 = vmatprep.subr.mxu0 0.0
    %v1096 = vand.u32 %v645, 4294901760
    %v1097 = vsub.f32 %v645, %v1096
    %v1098 = vand.u32 %v1097, 4294901760
    %1099 = vmatpush1.msra.mxu0 %v1098
    %1100 = vmatprep.subr.mxu0 0.0
    %v1101 = vand.u32 %v646, 4294901760
    %v1102 = vsub.f32 %v646, %v1101
    %v1103 = vand.u32 %v1102, 4294901760
    %1104 = vmatpush1.msra.mxu0 %v1103
    %1105 = vmatprep.subr.mxu0 0.0
    %v1106 = vand.u32 %v647, 4294901760
    %v1107 = vsub.f32 %v647, %v1106
    %v1108 = vand.u32 %v1107, 4294901760
    %1109 = vmatpush1.msra.mxu0 %v1108
    %1110 = vmatprep.subr.mxu0 0.0
    %v1111 = vand.u32 %v648, 4294901760
    %v1112 = vsub.f32 %v648, %v1111
    %v1113 = vand.u32 %v1112, 4294901760
    %1114 = vmatpush1.msra.mxu0 %v1113
    %1115 = vmatprep.subr.mxu0 0.0
    %v1116 = vand.u32 %v649, 4294901760
    %v1117 = vsub.f32 %v649, %v1116
    %v1118 = vand.u32 %v1117, 4294901760
    %1119 = vmatpush1.msra.mxu0 %v1118
    %1120 = vmatprep.subr.mxu0 0.0
    %1121 = vmatpush1.msra.mxu0 0.0
    %1122 = vmatprep.subr.mxu0 0.0
    %1123 = vmatpush1.msra.mxu0 0.0
    %1124 = vmatprep.subr.mxu0 0.0
    %1125 = vmatpush1.msra.mxu0 0.0
    %1126 = vmatprep.subr.mxu0 0.0
    %1127 = vmatpush1.msra.mxu0 0.0
    %1128 = vmatprep.subr.mxu0 0.0
    %1129 = vmatpush1.msra.mxu0 0.0
    %1130 = vmatprep.subr.mxu0 0.0
    %1131 = vmatpush1.msra.mxu0 0.0
    %1132 = vmatprep.subr.mxu0 0.0
    %1133 = vmatpush1.msra.mxu0 0.0
    %1134 = vmatprep.subr.mxu0 0.0
    %1135 = vmatpush1.msra.mxu0 0.0
    %1136 = vmatprep.subr.mxu0 0.0
    %1137 = vmatpush1.msra.mxu0 0.0
    %1138 = vmatprep.subr.mxu0 0.0
    %1139 = vmatpush1.msra.mxu0 0.0
    %1140 = vmatprep.subr.mxu0 0.0
    %1141 = vmatpush1.msra.mxu0 0.0
    %1142 = vmatprep.subr.mxu0 0.0
    %1143 = vmatpush1.msra.mxu0 0.0
    %1144 = vmatprep.subr.mxu0 0.0
    %1145 = vmatpush1.msra.mxu0 0.0
    %1146 = vmatprep.subr.mxu0 0.0
    %1147 = vmatpush1.msra.mxu0 0.0
    %1148 = vmatprep.subr.mxu0 0.0
    %1149 = vmatpush1.msra.mxu0 0.0
    %1150 = vmatprep.subr.mxu0 0.0
    %1151 = vmatpush1.msra.mxu0 0.0
    %1152 = vmatprep.subr.mxu0 0.0
    %1153 = vmatpush1.msra.mxu0 0.0
    %1154 = vmatprep.subr.mxu0 0.0
    %1155 = vmatpush1.msra.mxu0 0.0
    %1156 = vmatprep.subr.mxu0 0.0
    %1157 = vmatpush1.msra.mxu0 0.0
    %1158 = vmatprep.subr.mxu0 0.0
    %1159 = vmatpush1.msra.mxu0 0.0
    %1160 = vmatprep.mubr.f32.mxu0 0.0
    %v1161 = vand.u32 %v659, 4294901760
    %1162 = vmatmul.mubr.f32.gmra.mrb[0].mxu0 %v1161
    %v1163 = vpop.f32.mrb[0].mxu0
    %v1164 = vadd.f32 %v1057, %v1163
    %v1165 = vpop.f32.mrb[0].mxu0
    %1166 = vdwg.mxu0
    %1167 = vmatprep.subr.mxu0 0.0
    %v1168 = vand.u32 %v638, 4294901760
    %1169 = vmatpush1.msra.mxu0 %v1168
    %1170 = vmatprep.subr.mxu0 0.0
    %v1171 = vand.u32 %v639, 4294901760
    %1172 = vmatpush1.msra.mxu0 %v1171
    %1173 = vmatprep.subr.mxu0 0.0
    %v1174 = vand.u32 %v640, 4294901760
    %1175 = vmatpush1.msra.mxu0 %v1174
    %1176 = vmatprep.subr.mxu0 0.0
    %v1177 = vand.u32 %v641, 4294901760
    %1178 = vmatpush1.msra.mxu0 %v1177
    %1179 = vmatprep.subr.mxu0 0.0
    %v1180 = vand.u32 %v642, 4294901760
    %1181 = vmatpush1.msra.mxu0 %v1180
    %1182 = vmatprep.subr.mxu0 0.0
    %v1183 = vand.u32 %v643, 4294901760
    %1184 = vmatpush1.msra.mxu0 %v1183
    %1185 = vmatprep.subr.mxu0 0.0
    %v1186 = vand.u32 %v644, 4294901760
    %1187 = vmatpush1.msra.mxu0 %v1186
    %1188 = vmatprep.subr.mxu0 0.0
    %v1189 = vand.u32 %v645, 4294901760
    %1190 = vmatpush1.msra.mxu0 %v1189
    %1191 = vmatprep.subr.mxu0 0.0
    %v1192 = vand.u32 %v646, 4294901760
    %1193 = vmatpush1.msra.mxu0 %v1192
    %1194 = vmatprep.subr.mxu0 0.0
    %v1195 = vand.u32 %v647, 4294901760
    %1196 = vmatpush1.msra.mxu0 %v1195
    %1197 = vmatprep.subr.mxu0 0.0
    %v1198 = vand.u32 %v648, 4294901760
    %1199 = vmatpush1.msra.mxu0 %v1198
    %1200 = vmatprep.subr.mxu0 0.0
    %v1201 = vand.u32 %v649, 4294901760
    %1202 = vmatpush1.msra.mxu0 %v1201
    %1203 = vmatprep.subr.mxu0 0.0
    %1204 = vmatpush1.msra.mxu0 0.0
    %1205 = vmatprep.subr.mxu0 0.0
    %1206 = vmatpush1.msra.mxu0 0.0
    %1207 = vmatprep.subr.mxu0 0.0
    %1208 = vmatpush1.msra.mxu0 0.0
    %1209 = vmatprep.subr.mxu0 0.0
    %1210 = vmatpush1.msra.mxu0 0.0
    %1211 = vmatprep.subr.mxu0 0.0
    %1212 = vmatpush1.msra.mxu0 0.0
    %1213 = vmatprep.subr.mxu0 0.0
    %1214 = vmatpush1.msra.mxu0 0.0
    %1215 = vmatprep.subr.mxu0 0.0
    %1216 = vmatpush1.msra.mxu0 0.0
    %1217 = vmatprep.subr.mxu0 0.0
    %1218 = vmatpush1.msra.mxu0 0.0
    %1219 = vmatprep.subr.mxu0 0.0
    %1220 = vmatpush1.msra.mxu0 0.0
    %1221 = vmatprep.subr.mxu0 0.0
    %1222 = vmatpush1.msra.mxu0 0.0
    %1223 = vmatprep.subr.mxu0 0.0
    %1224 = vmatpush1.msra.mxu0 0.0
    %1225 = vmatprep.subr.mxu0 0.0
    %1226 = vmatpush1.msra.mxu0 0.0
    %1227 = vmatprep.subr.mxu0 0.0
    %1228 = vmatpush1.msra.mxu0 0.0
    %1229 = vmatprep.subr.mxu0 0.0
    %1230 = vmatpush1.msra.mxu0 0.0
    %1231 = vmatprep.subr.mxu0 0.0
    %1232 = vmatpush1.msra.mxu0 0.0
    %1233 = vmatprep.subr.mxu0 0.0
    %1234 = vmatpush1.msra.mxu0 0.0
    %1235 = vmatprep.subr.mxu0 0.0
    %1236 = vmatpush1.msra.mxu0 0.0
    %1237 = vmatprep.subr.mxu0 0.0
    %1238 = vmatpush1.msra.mxu0 0.0
    %1239 = vmatprep.subr.mxu0 0.0
    %1240 = vmatpush1.msra.mxu0 0.0
    %1241 = vmatprep.subr.mxu0 0.0
    %1242 = vmatpush1.msra.mxu0 0.0
    %1243 = vmatprep.mubr.f32.mxu0 0.0
    %v1244 = vand.u32 %v659, 4294901760
    %1245 = vmatmul.mubr.f32.gmra.mrb[0].mxu0 %v1244
    %v1246 = vpop.f32.mrb[0].mxu0
    %v1247 = vadd.f32 %v1164, %v1246
    %v1248 = vpop.f32.mrb[0].mxu0
    %1249 = vdwg.mxu0
    %v1250 = vmax.f32 %v1247, 0.0
    %1251 = vst [vmem:[%s5] sm:$0xff] %v1250
    // Predicated region
    $region30: #{hrv_feature_embedder.1} parent=1 // pred_check
      _
    $region31: #{hrv_feature_embedder.1} parent=1 // pred_check_branch
      %1253 = sbr.rel (0) target = $region33
    $region32: #{hrv_feature_embedder.1} parent=1 // pred_region
      _
    $region33: #{hrv_feature_embedder.1} parent=1 // pred_fallthru
      _
    // Predicated region
    $region34: #{hrv_feature_embedder.1} parent=1 // pred_check
      _
    $region35: #{hrv_feature_embedder.1} parent=1 // pred_check_branch
      %1255 = sbr.rel (0) target = $region37
    $region36: #{hrv_feature_embedder.1} parent=1 // pred_region
      _
    $region37: #{hrv_feature_embedder.1} parent=1 // pred_fallthru
      _
    %1256 = vsyncpa [#allocation3], 1
    %1257 = vsyncpa [#allocation5], 1

</llo_original>
